<compile_context>
chip_gen: v7x
topology: tpu7x:2x2x1
jax: 0.10.0
libtpu: 0.0.40
codegen_flags: <defaults>
</compile_context>

<pallas_src>
import math
import jax
import jax.numpy as jnp
from jax.experimental import pallas as pl
from jax.experimental.pallas import tpu as pltpu


def _round_up(x, m):
    return ((x + m - 1) // m) * m


def _patch_embed_matmul_kernel(patches_ref, w_ref, b_ref, out_ref):
    # patches_ref: (tm, K)  w_ref: (K, tn)  b_ref: (1, tn) f32  out_ref: (tm, tn)
    acc = jnp.dot(patches_ref[...], w_ref[...], preferred_element_type=jnp.float32)
    out_ref[...] = (acc + b_ref[...]).astype(out_ref.dtype)


def _vmem_budgets():
    """Generation-aware budgets derived from physical VMEM size."""
    phys = 64 * 1024 * 1024  # conservative default (v7x: 64 MiB per TC)
    try:
        info = pltpu.get_tpu_info()
        cap = getattr(info, "vmem_capacity_bytes", None)
        if cap:
            phys = int(cap)
    except Exception:
        pass
    tiling_budget = phys // 2          # 32 MiB on v7x, 64 MiB on v5e/v6e
    vmem_cap = (phys * 5) // 8         # ~40 MiB on v7x, ~80 MiB on v5e/v6e
    return tiling_budget, vmem_cap


def _pick_tile_n(npad, k, elt, vmem_budget):
    """Prefer a fully-resident weight (tn == Npad, 1-D grid over M)."""
    if 2 * k * npad * elt + 2 * npad * 4 <= vmem_budget // 2:
        return npad
    # Must tile N: prefer multiples of 256 (full MXU pass on v6e/v7x); avoid 384.
    for tn in (512, 256, 128):
        if npad % tn == 0:
            return tn
    return 128


def _pick_tile_m(m, k, tn, elt, out_elt, max_tm, vmem_budget):
    """Largest multiple-of-8 row tile fitting the VMEM budget (double-buffered).

    Never accepts a small exact divisor just to avoid padding; if no divisor
    >= max(256, cap/2) exists, pads the ragged tail instead.
    Returns (tm, needs_pad)."""
    cap = min(max_tm, _round_up(m, 8))
    cap -= cap % 8
    cap = max(cap, 8)

    def fits(tm):
        need = (2 * tm * k * elt          # double-buffered patches block
                + 2 * k * tn * elt        # weight block (assume double-buffered)
                + 2 * tm * tn * out_elt   # double-buffered output block
                + 2 * tn * 4)             # bias (f32)
        return need <= vmem_budget

    while cap > 8 and not fits(cap):
        cap -= 8

    min_acceptable = max(256, cap // 2)
    for tm in range(cap, min_acceptable - 1, -8):
        if m % tm == 0:
            return tm, False
    return cap, (m % cap != 0)


def patch_embedding_forward(x, weight, bias, patch_size, padding=2, *,
                            use_bf16=False, out_dtype=jnp.float32, max_tm=2048):
    """Forward pass of PatchEmbedding.

    x:      (B, C, H, W)  -- NCHW, like PyTorch
    weight: (embed_dim, C, kh, kw)
    bias:   (embed_dim,)
    Returns: (out, (Hp, Wp)) with out shape (B, Hp*Wp, embed_dim), dtype out_dtype.
    """
    B, C, H, W = x.shape
    kh, kw = patch_size
    # nn.Conv2d(..., stride=patch_size[0]) -> same stride along H and W
    assert kh == kw, "non-square patch would make stride != kernel along W"
    sh = sw = kh
    embed_dim = weight.shape[0]

    in_dtype = jnp.bfloat16 if use_bf16 else x.dtype
    elt = jnp.dtype(in_dtype).itemsize
    out_elt = jnp.dtype(out_dtype).itemsize

    # ---- im2col glue (plain JAX).  Cast FIRST so the narrow dtype rides the
    # single fused pad/reshape/transpose copy pass and the materialized (M, K)
    # buffer is already in the kernel's input dtype. ----
    x_c = x.astype(in_dtype)
    xp = jnp.pad(x_c, ((0, 0), (0, 0), (padding, padding), (padding, padding)))
    Hpad, Wpad = H + 2 * padding, W + 2 * padding
    Hp = (Hpad - kh) // sh + 1
    Wp = (Wpad - kw) // sw + 1
    # stride == kernel -> non-overlapping windows: crop then block-reshape
    xp = xp[:, :, : Hp * sh, : Wp * sw]
    patches = xp.reshape(B, C, Hp, kh, Wp, kw)
    patches = patches.transpose(0, 2, 4, 1, 3, 5).reshape(B * Hp * Wp, C * kh * kw)

    M, K = patches.shape
    N = embed_dim

    # Lane padding only when it buys unmasked stores (N not already 128-aligned).
    Npad = _round_up(N, 128) if (N % 128) else N
    w2d = weight.reshape(embed_dim, K).T.astype(in_dtype)   # (K, N), K ordered (C, kh, kw)
    b1d = bias.astype(jnp.float32)
    if Npad != N:
        w2d = jnp.pad(w2d, ((0, 0), (0, Npad - N)))
        b1d = jnp.pad(b1d, (0, Npad - N))
    b2d = b1d.reshape(1, Npad)

    tiling_budget, vmem_cap = _vmem_budgets()
    tn = _pick_tile_n(Npad, K, elt, tiling_budget)
    tm, needs_pad = _pick_tile_m(M, K, tn, elt, out_elt, max_tm, tiling_budget)

    Mp = M
    if needs_pad:
        Mp = pl.cdiv(M, tm) * tm
        patches = jnp.pad(patches, ((0, Mp - M), (0, 0)))

    num_m = Mp // tm
    num_n = Npad // tn
    weight_resident = (num_n == 1)

    if weight_resident:
        # 1-D grid over M: weight/bias block index constant -> DMA'd once.
        grid = (num_m,)
        in_specs = [
            pl.BlockSpec((tm, K), lambda i: (i, 0)),
            pl.BlockSpec((K, tn), lambda i: (0, 0)),
            pl.BlockSpec((1, tn), lambda i: (0, 0)),
        ]
        out_specs = pl.BlockSpec((tm, tn), lambda i: (i, 0))
        dims = ("parallel",)
    else:
        # N outer / M inner: weight block index constant across the inner loop,
        # so Pallas reuses it instead of re-DMAing per M tile.
        grid = (num_n, num_m)
        in_specs = [
            pl.BlockSpec((tm, K), lambda j, i: (i, 0)),
            pl.BlockSpec((K, tn), lambda j, i: (0, j)),
            pl.BlockSpec((1, tn), lambda j, i: (0, j)),
        ]
        out_specs = pl.BlockSpec((tm, tn), lambda j, i: (i, j))
        dims = ("parallel", "parallel")

    vmem_need = (2 * tm * K * elt + 2 * K * tn * elt
                 + 2 * tm * tn * out_elt + 2 * tn * 4)
    vmem_limit = int(min(max(2 * vmem_need, 16 * 1024 * 1024), vmem_cap))

    cost = pl.CostEstimate(
        flops=2 * Mp * K * Npad,
        transcendentals=0,
        bytes_accessed=(Mp * K * elt * (1 if weight_resident else num_n)  # patch reads
                        + K * Npad * elt                                  # weight read once
                        + Npad * 4                                        # bias
                        + Mp * Npad * out_elt),                           # output write
    )

    out = pl.pallas_call(
        _patch_embed_matmul_kernel,
        out_shape=jax.ShapeDtypeStruct((Mp, Npad), out_dtype),
        grid_spec=pltpu.PrefetchScalarGridSpec(
            num_scalar_prefetch=0,
            grid=grid,
            in_specs=in_specs,
            out_specs=out_specs,
        ),
        compiler_params=pltpu.CompilerParams(
            dimension_semantics=dims,
            vmem_limit_bytes=vmem_limit,
        ),
        cost_estimate=cost,
    )(patches, w2d, b2d)

    if Mp != M or Npad != N:
        out = out[:M, :N]
    out = out.reshape(B, Hp * Wp, embed_dim)
    return out, (Hp, Wp)


def _reference_forward(x, weight, bias, patch_size, padding=2):
    """Pure-JAX reference using lax conv (matches torch.nn.Conv2d semantics)."""
    kh, kw = patch_size
    y = jax.lax.conv_general_dilated(
        x, weight,
        window_strides=(kh, kh),
        padding=((padding, padding), (padding, padding)),
        dimension_numbers=("NCHW", "OIHW", "NCHW"),
    ) + bias.reshape(1, -1, 1, 1)
    B, E, Hp, Wp = y.shape
    y = y.reshape(B, E, Hp * Wp).transpose(0, 2, 1)
    return y, (Hp, Wp)


if __name__ == "__main__":
    # small shapes consistent with the module (in_channels=3, square patch)
    B, C, H, W = 2, 3, 32, 32
    patch = 8
    embed_dim = 32
    padding = 2

    key = jax.random.PRNGKey(0)
    kx, kw_, kb = jax.random.split(key, 3)

    x = jax.random.normal(kx, (B, C, H, W), dtype=jnp.float32)

    # deterministic parameter init (Conv2d-style fan-in scaling)
    fan_in = C * patch * patch
    bound = 1.0 / math.sqrt(fan_in)
    weight = jax.random.uniform(kw_, (embed_dim, C, patch, patch),
                                minval=-bound, maxval=bound, dtype=jnp.float32)
    bias = jax.random.uniform(kb, (embed_dim,),
                              minval=-bound, maxval=bound, dtype=jnp.float32)

    ref, (Hp_r, Wp_r) = _reference_forward(x, weight, bias, (patch, patch), padding)

    # f32 path (exactness check)
    out, (Hp, Wp) = patch_embedding_forward(x, weight, bias, (patch, patch), padding)
    out = jax.block_until_ready(out)
    assert (Hp, Wp) == (Hp_r, Wp_r), f"shape mismatch {(Hp, Wp)} vs {(Hp_r, Wp_r)}"
    assert out.shape == (B, Hp * Wp, embed_dim), out.shape
    assert jnp.allclose(out, ref, atol=1e-4, rtol=1e-4), "numeric mismatch vs reference (f32)"

    # bf16-input fast path (v6e/v7x MXU rate), f32 accumulate -> looser tolerance
    out_bf16, _ = patch_embedding_forward(x, weight, bias, (patch, patch), padding,
                                          use_bf16=True)
    out_bf16 = jax.block_until_ready(out_bf16)
    assert jnp.allclose(out_bf16, ref, atol=1e-1, rtol=1e-2), "numeric mismatch vs reference (bf16)"

    print("KERNEL_OK")
</pallas_src>

<mosaic_0001>
module attributes {stable_mosaic.version = 11 : i64} {
  func.func @_patch_embed_matmul_kernel(%arg0: i32, %arg1: memref<32x192xf32, #tpu.memory_space<vmem>>, %arg2: memref<192x128xf32, #tpu.memory_space<vmem>>, %arg3: memref<1x128xf32, #tpu.memory_space<vmem>>, %arg4: memref<32x128xf32, #tpu.memory_space<vmem>>) attributes {dimension_semantics = [#tpu.dimension_semantics<parallel>], iteration_bounds = array<i64: 1>, scalar_prefetch = 0 : i64, scratch_operands = 0 : i64, tpu.core_type = #tpu.core_type<tc>, window_params = [{transform_indices = @transform_0, window_bounds = array<i64: 32, 192>}, {pipeline_mode = #tpu.pipeline_mode<synchronous>, transform_indices = @transform_1, window_bounds = array<i64: 192, 128>}, {pipeline_mode = #tpu.pipeline_mode<synchronous>, transform_indices = @transform_2, window_bounds = array<i64: 1, 128>}, {transform_indices = @transform_3, window_bounds = array<i64: 32, 128>}]} {
    %c0 = arith.constant 0 : index
    %c0_0 = arith.constant 0 : index
    %0 = vector.load %arg1[%c0, %c0_0] : memref<32x192xf32, #tpu.memory_space<vmem>>, vector<32x192xf32>
    %c0_1 = arith.constant 0 : index
    %c0_2 = arith.constant 0 : index
    %1 = vector.load %arg2[%c0_1, %c0_2] : memref<192x128xf32, #tpu.memory_space<vmem>>, vector<192x128xf32>
    %cst = arith.constant dense<0.000000e+00> : vector<32x128xf32>
    %2 = tpu.matmul %0, %1, %cst {dimension_numbers = #tpu.dot_dimension_numbers<[1], [0], [0], [1], [0, 0, 1, 1], [], []>} : vector<32x192xf32>, vector<192x128xf32>, vector<32x128xf32> -> vector<32x128xf32>
    %c0_3 = arith.constant 0 : index
    %c0_4 = arith.constant 0 : index
    %3 = vector.load %arg3[%c0_3, %c0_4] : memref<1x128xf32, #tpu.memory_space<vmem>>, vector<1x128xf32>
    %4 = vector.broadcast %3 : vector<1x128xf32> to vector<32x128xf32>
    %5 = arith.addf %2, %4 : vector<32x128xf32>
    %c0_5 = arith.constant 0 : index
    %c0_6 = arith.constant 0 : index
    %6 = vector.load %arg4[%c0_5, %c0_6] : memref<32x128xf32, #tpu.memory_space<vmem>>, vector<32x128xf32>
    tpu.vector_store %arg4[%c0_5, %c0_6], %5 {strides = array<i32>} : memref<32x128xf32, #tpu.memory_space<vmem>>, vector<32x128xf32>,
    return
  }
  func.func @transform_0(%arg0: i32) -> (i32, i32) {
    %c0_i32 = arith.constant 0 : i32
    %c0_i32_0 = arith.constant 0 : i32
    return %arg0, %c0_i32 : i32, i32
  }
  func.func @transform_1(%arg0: i32) -> (i32, i32) {
    %c0_i32 = arith.constant 0 : i32
    %c0_i32_0 = arith.constant 0 : i32
    %c0_i32_1 = arith.constant 0 : i32
    return %c0_i32, %c0_i32_0 : i32, i32
  }
  func.func @transform_2(%arg0: i32) -> (i32, i32) {
    %c0_i32 = arith.constant 0 : i32
    %c0_i32_0 = arith.constant 0 : i32
    %c0_i32_1 = arith.constant 0 : i32
    return %c0_i32, %c0_i32_0 : i32, i32
  }
  func.func @transform_3(%arg0: i32) -> (i32, i32) {
    %c0_i32 = arith.constant 0 : i32
    %c0_i32_0 = arith.constant 0 : i32
    return %arg0, %c0_i32 : i32, i32
  }
}

</mosaic_0001>

<llo_original>
// kernel: tpu_custom_call.1
$region0: #{tpu_custom_call.1}
  #allocation0 [shape = 'u32[]', space=smem, size = 0x4, offset = 0x4, fixed_abs, tag = 'smem constant byte address 0x4 - core index']
  #allocation1 [shape = 'u32[144,128]{1,0:T(1,128)}', space=vmem, size = 0x12000, scoped, tag = 'internal scratch']
  %s0 = inlined_call_operand.hbm [shape: f32[32,192], index: 0, kind: input, shape index: {}]
  %s1 = inlined_call_operand.hbm [shape: f32[192,128], index: 1, kind: input, shape index: {}]
  %s2 = inlined_call_operand.vmem [shape: f32[1,128], index: 2, kind: input, shape index: {}]
  %s3 = inlined_call_operand.hbm [shape: f32[32,128], index: 3, kind: output, shape index: {}]
  %s4 = sld [smem:[#allocation0]]
  $region30: #{tpu_custom_call.1} parent=0
    _
  %s6 = ssub.s32 1, %s4
  %s7 = scalar_select 0, %s6, %s4
  $region1: #{tpu_custom_call.1} parent=0
    #allocation2 [shape = 'u8[32768]{0}', space=vmem, size = 0x8000, scoped, tag = 'input window, operand 0, single buffered']
    #allocation3 [shape = 's32[1]{0}', space=sflag, size = 0x4, scoped, tag = 'scoped memory for tpu_custom_call.1']
    #allocation4 [shape = 's32[1]{0}', space=sflag, size = 0x4, scoped, tag = 'scoped memory for tpu_custom_call.1']
    #allocation5 [shape = 'u8[98304]{0}', space=vmem, size = 0x18000, scoped, tag = 'input window, operand 1, single buffered']
    #allocation6 [shape = 's32[1]{0}', space=sflag, size = 0x4, scoped, tag = 'scoped memory for tpu_custom_call.1']
    #allocation7 [shape = 'u8[16384]{0}', space=vmem, size = 0x4000, scoped, tag = 'output window, operand 0, single buffered']
    %8 = vsyncpa [#allocation3], 0
    %9 = vsyncpa [#allocation6], 0
    %10 = vsyncpa [#allocation4], 0
    // Predicated region
    $region2: #{tpu_custom_call.1} parent=1 // pred_check
      _
    $region3: #{tpu_custom_call.1} parent=1 // pred_check_branch
      %12 = sbr.rel (0) target = $region5
    $region4: #{tpu_custom_call.1} parent=1 // pred_region
      %s14 = ssub.s32 1024, 1024
      %15 = vsyncadd [#allocation3], %s14
      %s16 = sshll.u32 [#allocation2], 4
      %s17 = int_to_ptr.vmem [resolvable:$true] %s16
      %22 = dma.hbm_to_vmem [thread:$0]  %s0, 1024, %s17, [#allocation3], 256, 256, 16
    $region5: #{tpu_custom_call.1} parent=1 // pred_fallthru
      _
    // Predicated region
    $region6: #{tpu_custom_call.1} parent=1 // pred_check
      _
    $region7: #{tpu_custom_call.1} parent=1 // pred_check_branch
      %24 = sbr.rel (0) target = $region9
    $region8: #{tpu_custom_call.1} parent=1 // pred_region
      %s26 = ssub.s32 3072, 3072
      %27 = vsyncadd [#allocation6], %s26
      %s28 = sshll.u32 [#allocation5], 4
      %s29 = int_to_ptr.vmem [resolvable:$true] %s28
      %34 = dma.hbm_to_vmem [thread:$0]  %s1, 3072, %s29, [#allocation6], 128, 128, 8
    $region9: #{tpu_custom_call.1} parent=1 // pred_fallthru
      _
    // Predicated region
    $region10: #{tpu_custom_call.1} parent=1 // pred_check
      _
    $region11: #{tpu_custom_call.1} parent=1 // pred_check_branch
      %36 = sbr.rel (0) target = $region13
    $region12: #{tpu_custom_call.1} parent=1 // pred_region
      _
    $region13: #{tpu_custom_call.1} parent=1 // pred_fallthru
      _
    // Predicated region
    $region14: #{tpu_custom_call.1} parent=1 // pred_check
      _
    $region15: #{tpu_custom_call.1} parent=1 // pred_check_branch
      %38 = sbr.rel (0) target = $region17
    $region16: #{tpu_custom_call.1} parent=1 // pred_region
      %39 = dma.done [#allocation3], 1024
    $region17: #{tpu_custom_call.1} parent=1 // pred_fallthru
      _
    // Predicated region
    $region18: #{tpu_custom_call.1} parent=1 // pred_check
      _
    $region19: #{tpu_custom_call.1} parent=1 // pred_check_branch
      %41 = sbr.rel (0) target = $region21
    $region20: #{tpu_custom_call.1} parent=1 // pred_region
      %42 = dma.done [#allocation6], 3072
    $region21: #{tpu_custom_call.1} parent=1 // pred_fallthru
      _
    %v43 = vld [vmem:[#allocation2] sm:$0xff]
    %v44 = vld [vmem:[#allocation2 + $0x8] sm:$0xff]
    %v45 = vld [vmem:[#allocation2 + $0x10] sm:$0xff]
    %v46 = vld [vmem:[#allocation2 + $0x18] sm:$0xff]
    %v47 = vld [vmem:[#allocation2 + $0x20] sm:$0xff]
    %v48 = vld [vmem:[#allocation2 + $0x28] sm:$0xff]
    %v49 = vld [vmem:[#allocation2 + $0x30] sm:$0xff]
    %v50 = vld [vmem:[#allocation2 + $0x38] sm:$0xff]
    %v51 = vld [vmem:[#allocation5] sm:$0xff]
    %v52 = vld [vmem:[#allocation5 + $0x8] sm:$0xff]
    %v53 = vld [vmem:[#allocation5 + $0x10] sm:$0xff]
    %v54 = vld [vmem:[#allocation5 + $0x18] sm:$0xff]
    %v55 = vld [vmem:[#allocation5 + $0x20] sm:$0xff]
    %v56 = vld [vmem:[#allocation5 + $0x28] sm:$0xff]
    %v57 = vld [vmem:[#allocation5 + $0x30] sm:$0xff]
    %v58 = vld [vmem:[#allocation5 + $0x38] sm:$0xff]
    %v59 = vld [vmem:[#allocation5 + $0x40] sm:$0xff]
    %v60 = vld [vmem:[#allocation5 + $0x48] sm:$0xff]
    %v61 = vld [vmem:[#allocation5 + $0x50] sm:$0xff]
    %v62 = vld [vmem:[#allocation5 + $0x58] sm:$0xff]
    %v63 = vld [vmem:[#allocation5 + $0x60] sm:$0xff]
    %v64 = vld [vmem:[#allocation5 + $0x68] sm:$0xff]
    %v65 = vld [vmem:[#allocation5 + $0x70] sm:$0xff]
    %v66 = vld [vmem:[#allocation5 + $0x78] sm:$0xff]
    %v67 = vld [vmem:[#allocation5 + $0x80] sm:$0xff]
    %v68 = vld [vmem:[#allocation5 + $0x88] sm:$0xff]
    %v69 = vld [vmem:[#allocation5 + $0x90] sm:$0xff]
    %v70 = vld [vmem:[#allocation5 + $0x98] sm:$0xff]
    %v71 = vld [vmem:[#allocation5 + $0xa0] sm:$0xff]
    %v72 = vld [vmem:[#allocation5 + $0xa8] sm:$0xff]
    %v73 = vld [vmem:[#allocation5 + $0xb0] sm:$0xff]
    %v74 = vld [vmem:[#allocation5 + $0xb8] sm:$0xff]
    %v75 = vld [vmem:[%s2] sm:$0x1]
    %v77 = vlaneseq
    %v78 = vshrl.u32 %v77, 7
    %v79 = vsub.s32 0, %v78
    %v80 = vrot.slane %v75, %v79
    %vm82 = vcmask 523264
    %v84 = vsel %vm82, %v44, 0
    %v87 = vsel %vm82, %v46, 0
    %v90 = vsel %vm82, %v48, 0
    %v93 = vsel %vm82, %v50, 0
    %95 = vmatprep.subr.mxu0 0.0
    %96 = vmatpush1.msra.mxu0 %v51
    %97 = vmatprep.subr.mxu0 0.0
    %98 = vmatpush1.msra.mxu0 %v52
    %99 = vmatprep.subr.mxu0 0.0
    %100 = vmatpush1.msra.mxu0 %v53
    %101 = vmatprep.subr.mxu0 0.0
    %102 = vmatpush1.msra.mxu0 %v54
    %103 = vmatprep.subr.mxu0 0.0
    %104 = vmatpush1.msra.mxu0 %v55
    %105 = vmatprep.subr.mxu0 0.0
    %106 = vmatpush1.msra.mxu0 %v56
    %107 = vmatprep.subr.mxu0 0.0
    %108 = vmatpush1.msra.mxu0 %v57
    %109 = vmatprep.subr.mxu0 0.0
    %110 = vmatpush1.msra.mxu0 %v58
    %111 = vmatprep.subr.mxu0 0.0
    %112 = vmatpush1.msra.mxu0 %v59
    %113 = vmatprep.subr.mxu0 0.0
    %114 = vmatpush1.msra.mxu0 %v60
    %115 = vmatprep.subr.mxu0 0.0
    %116 = vmatpush1.msra.mxu0 %v61
    %117 = vmatprep.subr.mxu0 0.0
    %118 = vmatpush1.msra.mxu0 %v62
    %119 = vmatprep.subr.mxu0 0.0
    %120 = vmatpush1.msra.mxu0 %v63
    %121 = vmatprep.subr.mxu0 0.0
    %122 = vmatpush1.msra.mxu0 %v64
    %123 = vmatprep.subr.mxu0 0.0
    %124 = vmatpush1.msra.mxu0 %v65
    %125 = vmatprep.subr.mxu0 0.0
    %126 = vmatpush1.msra.mxu0 %v66
    %127 = vmatprep.subr.mxu0 0.0
    %128 = vmatpush1.msra.mxu0 %v67
    %129 = vmatprep.subr.mxu0 0.0
    %130 = vmatpush1.msra.mxu0 %v68
    %131 = vmatprep.subr.mxu0 0.0
    %132 = vmatpush1.msra.mxu0 %v69
    %133 = vmatprep.subr.mxu0 0.0
    %134 = vmatpush1.msra.mxu0 %v70
    %135 = vmatprep.subr.mxu0 0.0
    %136 = vmatpush1.msra.mxu0 %v71
    %137 = vmatprep.subr.mxu0 0.0
    %138 = vmatpush1.msra.mxu0 %v72
    %139 = vmatprep.subr.mxu0 0.0
    %140 = vmatpush1.msra.mxu0 %v73
    %141 = vmatprep.subr.mxu0 0.0
    %142 = vmatpush1.msra.mxu0 %v74
    %143 = vmatprep.subr.mxu0 0.0
    %144 = vmatpush1.msra.mxu0 0.0
    %145 = vmatprep.subr.mxu0 0.0
    %146 = vmatpush1.msra.mxu0 0.0
    %147 = vmatprep.subr.mxu0 0.0
    %148 = vmatpush1.msra.mxu0 0.0
    %149 = vmatprep.subr.mxu0 0.0
    %150 = vmatpush1.msra.mxu0 0.0
    %151 = vmatprep.subr.mxu0 0.0
    %152 = vmatpush1.msra.mxu0 0.0
    %153 = vmatprep.subr.mxu0 0.0
    %154 = vmatpush1.msra.mxu0 0.0
    %155 = vmatprep.subr.mxu0 0.0
    %156 = vmatpush1.msra.mxu0 0.0
    %157 = vmatprep.subr.mxu0 0.0
    %158 = vmatpush1.msra.mxu0 0.0
    %159 = vmatprep.mubr.f32.mxu0 %v84
    %160 = vmatmul.mubr.f32.gmra.mrb[0].mxu0 %v43
    %v161 = vpop.f32.mrb[0].mxu0
    %v162 = vadd.f32 %v80, %v161
    %v163 = vpop.f32.mrb[0].mxu0
    %164 = vmatprep.mubr.f32.mxu0 %v87
    %165 = vmatmul.mubr.f32.gmra.mrb[0].mxu0 %v45
    %v166 = vpop.f32.mrb[0].mxu0
    %v167 = vadd.f32 %v80, %v166
    %v168 = vpop.f32.mrb[0].mxu0
    %169 = vmatprep.mubr.f32.mxu0 %v90
    %170 = vmatmul.mubr.f32.gmra.mrb[0].mxu0 %v47
    %v171 = vpop.f32.mrb[0].mxu0
    %v172 = vadd.f32 %v80, %v171
    %v173 = vpop.f32.mrb[0].mxu0
    %174 = vmatprep.mubr.f32.mxu0 %v93
    %175 = vmatmul.mubr.f32.gmra.mrb[0].mxu0 %v49
    %v176 = vpop.f32.mrb[0].mxu0
    %v177 = vadd.f32 %v80, %v176
    %v178 = vpop.f32.mrb[0].mxu0
    %179 = vdwg.mxu0
    %180 = vst [vmem:[#allocation7] sm:$0xff] %v162
    %181 = vst [vmem:[#allocation7 + $0x8] sm:$0xff] %v167
    %182 = vst [vmem:[#allocation7 + $0x10] sm:$0xff] %v172
    %183 = vst [vmem:[#allocation7 + $0x18] sm:$0xff] %v177
    // Predicated region
    $region22: #{tpu_custom_call.1} parent=1 // pred_check
      _
    $region23: #{tpu_custom_call.1} parent=1 // pred_check_branch
      %185 = sbr.rel (0) target = $region25
    $region24: #{tpu_custom_call.1} parent=1 // pred_region
      %s187 = ssub.s32 512, 512
      %188 = vsyncadd [#allocation4], %s187
      %s189 = sshll.u32 [#allocation7], 4
      %s190 = int_to_ptr.vmem [resolvable:$true] %s189
      %195 = dma.vmem_to_hbm [thread:$0]  %s190, 512, %s3, [#allocation4], 128, 128, 8
    $region25: #{tpu_custom_call.1} parent=1 // pred_fallthru
      _
    // Predicated region
    $region26: #{tpu_custom_call.1} parent=1 // pred_check
      _
    $region27: #{tpu_custom_call.1} parent=1 // pred_check_branch
      %197 = sbr.rel (0) target = $region29
    $region28: #{tpu_custom_call.1} parent=1 // pred_region
      %198 = dma.done [#allocation4], 512
    $region29: #{tpu_custom_call.1} parent=1 // pred_fallthru
      _
    %199 = vsyncpa [#allocation3], 1
    %200 = vsyncpa [#allocation6], 1
    %201 = vsyncpa [#allocation4], 1

</llo_original>
